<compile_context>
chip_gen: v7x
topology: tpu7x:2x2x1
jax: 0.10.0
libtpu: 0.0.40
codegen_flags: <defaults>
</compile_context>

<pallas_src>
import functools

import numpy as np
import jax
import jax.numpy as jnp
from jax import lax
from jax.experimental import pallas as pl
from jax.experimental.pallas import tpu as pltpu


_TARGET_BLOCK_BYTES = 8 * 1024 * 1024    # per-step (input+output) HBM budget
_VMEM_BUDGET_BYTES = 32 * 1024 * 1024    # per-step VMEM budget (blocks + intermediates)
_VMEM_LIMIT_CAP = 48 * 1024 * 1024       # leaves headroom on v7x's 64 MiB physical VMEM
_MAX_HEIGHT_SEGMENTS = 128               # above this, use the matmul height fallback


# --------------------------------------------------------------------------- #
# trace-time planning (pure python, cached; nothing is uploaded to the device)
# --------------------------------------------------------------------------- #

def _nearest_src_indices(in_size, out_size):
    dst = np.arange(out_size, dtype=np.int64)
    return np.clip((dst * in_size) // out_size, 0, in_size - 1)


@functools.lru_cache(maxsize=None)
def _height_plan(H, H_out):
    """Decompose the nearest row mapping into static broadcast / slice segments."""
    if H_out == H:
        return ("identity", ())
    src = [int(v) for v in _nearest_src_indices(H, H_out)]
    segs = []
    p = 0
    while p < H_out:
        v = src[p]
        q = p
        while q + 1 < H_out and src[q + 1] == v:          # constant run -> broadcast
            q += 1
        if q > p:
            segs.append(("bcast", v, q - p + 1))
            p = q + 1
        else:                                             # unit-stride run -> slice
            q = p
            while q + 1 < H_out and src[q + 1] == src[q] + 1:
                q += 1
            segs.append(("slice", v, q - p + 1))
            p = q + 1
    if len(segs) > _MAX_HEIGHT_SEGMENTS:
        return ("matmul", ())
    return ("segments", tuple(segs))


# --------------------------------------------------------------------------- #
# kernel
# --------------------------------------------------------------------------- #

def _make_kernel(B, H, W, H_out, W_out, plan):
    kind, segs = plan
    same_w = (W_out == W)

    def kernel(x_ref, o_ref):
        x = x_ref[...]                                    # (B, H, W)

        # ---- width expansion: one-hot selector from iotas + single MXU matmul ----
        if same_w:
            xw = x                                        # width mapping is identity
        else:
            # rw[w, q] = 1  iff  floor(q*W / W_out) == w
            #          <=>  w*W_out <= q*W < (w+1)*W_out   (mul/compare only, no div)
            wi = lax.broadcasted_iota(jnp.int32, (W, W_out), 0) * W_out
            qi = lax.broadcasted_iota(jnp.int32, (W, W_out), 1) * W
            rw = jnp.logical_and(wi <= qi, qi < wi + W_out).astype(x.dtype)
            xw = jnp.dot(x.reshape(B * H, W), rw,
                         preferred_element_type=jnp.float32)      # (B*H, W_out) f32
            xw = xw.astype(o_ref.dtype).reshape(B, H, W_out)

        # ---- height expansion: zero-FLOP replication straight into the output ----
        if kind == "identity":
            o_ref[...] = xw
        elif kind == "segments":
            off = 0
            for tag, v, L in segs:
                if tag == "bcast":                         # one source row -> L rows
                    o_ref[:, off:off + L, :] = jnp.broadcast_to(
                        xw[:, v:v + 1, :], (B, L, W_out))
                else:                                      # contiguous source rows
                    o_ref[:, off:off + L, :] = xw[:, v:v + L, :]
                off += L
        else:  # "matmul": safe fallback for very large H/H_out (rarely used)
            pi = lax.broadcasted_iota(jnp.int32, (H_out, H), 0) * H
            hi = lax.broadcasted_iota(jnp.int32, (H_out, H), 1) * H_out
            rh = jnp.logical_and(hi <= pi, pi < hi + H_out).astype(xw.dtype)
            rh_b = jnp.broadcast_to(rh, (B, H_out, H))
            y = lax.dot_general(rh_b, xw,
                                dimension_numbers=(((2,), (1,)), ((0,), (0,))),
                                preferred_element_type=jnp.float32)
            o_ref[...] = y.astype(o_ref.dtype)

    return kernel


# --------------------------------------------------------------------------- #
# wrapper
# --------------------------------------------------------------------------- #

def interpolate_nearest(x, size=None, scale_factor=None, _force_height_matmul=False):
    """Equivalent of Interpolate(size, scale_factor, mode='nearest').forward(x), NCHW."""
    N, C, H, W = x.shape
    if size is not None:
        if isinstance(size, int):
            H_out = W_out = int(size)
        else:
            H_out, W_out = (int(s) for s in size)
    else:
        if np.isscalar(scale_factor):
            sf_h = sf_w = float(scale_factor)
        else:
            sf_h, sf_w = (float(s) for s in scale_factor)
        H_out, W_out = int(np.floor(H * sf_h)), int(np.floor(W * sf_w))

    dtype = x.dtype
    itemsize = jnp.dtype(dtype).itemsize
    NC = N * C

    plan = _height_plan(H, H_out)
    if _force_height_matmul and plan[0] != "identity":
        plan = ("matmul", ())

    # ---- channel-block sizing: big DMAs, bounded VMEM, >=4 steps when possible ----
    per_chan_io = (H * W + H_out * W_out) * itemsize
    per_chan_vmem = (2 * per_chan_io                        # double-buffered in/out
                     + H * W_out * (4 + itemsize)           # f32 matmul result + cast
                     + 2 * H_out * W_out * itemsize)        # height-expanded values
    B = min(_TARGET_BLOCK_BYTES // per_chan_io,
            _VMEM_BUDGET_BYTES // per_chan_vmem)
    if NC >= 32:          # keep >=4 grid steps (pipelining + both v7x TensorCores)
        B = min(B, NC // 4)
    elif NC >= 16:
        B = min(B, NC // 2)
    B = min(B, NC)
    B = max(1, B)
    if B >= 8:
        B = (B // 8) * 8
    B = max(1, B)

    NC_pad = pl.cdiv(NC, B) * B
    grid = (NC_pad // B,)

    x3 = x.reshape(NC, H, W)
    if NC_pad != NC:
        x3 = jnp.pad(x3, ((0, NC_pad - NC), (0, 0), (0, 0)))

    vmem_need = B * per_chan_vmem
    vmem_limit = int(min(max(int(vmem_need * 1.4) + (1 << 20), 32 << 20),
                         _VMEM_LIMIT_CAP))

    # FLOPs of the separable path only (height replication is pure data movement).
    flops = 0 if W_out == W else 2 * NC * H * W * W_out
    if plan[0] == "matmul":
        flops += 2 * NC * H_out * H * W_out
    cost = pl.CostEstimate(flops=max(int(flops), 1), transcendentals=0,
                           bytes_accessed=int(NC * per_chan_io))

    out3 = pl.pallas_call(
        _make_kernel(B, H, W, H_out, W_out, plan),
        out_shape=jax.ShapeDtypeStruct((NC_pad, H_out, W_out), dtype),
        grid_spec=pltpu.PrefetchScalarGridSpec(
            num_scalar_prefetch=0,
            grid=grid,
            in_specs=[pl.BlockSpec((B, H, W), lambda i: (i, 0, 0))],
            out_specs=pl.BlockSpec((B, H_out, W_out), lambda i: (i, 0, 0)),
        ),
        compiler_params=pltpu.CompilerParams(
            dimension_semantics=("parallel",),
            vmem_limit_bytes=vmem_limit,
        ),
        cost_estimate=cost,
    )(x3)
    return out3[:NC].reshape(N, C, H_out, W_out)


# --------------------------------------------------------------------------- #
# self-test
# --------------------------------------------------------------------------- #

if __name__ == "__main__":
    key = jax.random.PRNGKey(0)
    N, C, H, W = 2, 4, 16, 16
    x = jax.random.normal(key, (N, C, H, W), dtype=jnp.float32)
    x_np = np.asarray(x)

    # Typical ACGAN usage: Interpolate(scale_factor=2, mode='nearest')
    y = jax.block_until_ready(interpolate_nearest(x, scale_factor=2))
    ref = np.repeat(np.repeat(x_np, 2, axis=2), 2, axis=3)
    assert y.shape == (N, C, 2 * H, 2 * W), y.shape
    np.testing.assert_allclose(np.asarray(y), ref, rtol=0, atol=0)

    # Non-uniform `size=` path (mixed broadcast/slice height segments, odd widths)
    y2 = jax.block_until_ready(interpolate_nearest(x, size=(24, 40)))
    sh = (np.arange(24) * H) // 24
    sw = (np.arange(40) * W) // 40
    ref2 = x_np[:, :, sh[:, None], sw[None, :]]
    np.testing.assert_allclose(np.asarray(y2), ref2, rtol=0, atol=0)

    # Downscale (strided nearest selection)
    y3 = jax.block_until_ready(interpolate_nearest(x, size=8))
    s8 = (np.arange(8) * H) // 8
    ref3 = x_np[:, :, s8[:, None], s8[None, :]]
    np.testing.assert_allclose(np.asarray(y3), ref3, rtol=0, atol=0)

    # Exercise the large-map height-matmul fallback on the small shape as well
    y4 = jax.block_until_ready(
        interpolate_nearest(x, scale_factor=2, _force_height_matmul=True))
    np.testing.assert_allclose(np.asarray(y4), ref, rtol=0, atol=0)

    print("KERNEL_OK")
</pallas_src>

<mosaic_0001>
module attributes {stable_mosaic.version = 11 : i64} {
  func.func @kernel(%arg0: i32, %arg1: memref<8x16x16xf32, #tpu.memory_space<vmem>>, %arg2: memref<8x32x32xf32, #tpu.memory_space<vmem>>) attributes {dimension_semantics = [#tpu.dimension_semantics<parallel>], iteration_bounds = array<i64: 1>, scalar_prefetch = 0 : i64, scratch_operands = 0 : i64, tpu.core_type = #tpu.core_type<tc>, window_params = [{transform_indices = @transform_0, window_bounds = array<i64: 8, 16, 16>}, {transform_indices = @transform_1, window_bounds = array<i64: 8, 32, 32>}]} {
    %c0 = arith.constant 0 : index
    %c0_0 = arith.constant 0 : index
    %c0_1 = arith.constant 0 : index
    %0 = vector.load %arg1[%c0, %c0_0, %c0_1] : memref<8x16x16xf32, #tpu.memory_space<vmem>>, vector<8x16x16xf32>
    %1 = tpu.iota {dimensions = array<i32: 0>} : vector<16x32xi32>
    %c32_i32 = arith.constant 32 : i32
    %2 = vector.broadcast %c32_i32 : i32 to vector<16x32xi32>
    %3 = arith.muli %1, %2 : vector<16x32xi32>
    %4 = tpu.iota {dimensions = array<i32: 1>} : vector<16x32xi32>
    %c16_i32 = arith.constant 16 : i32
    %5 = vector.broadcast %c16_i32 : i32 to vector<16x32xi32>
    %6 = arith.muli %4, %5 : vector<16x32xi32>
    %7 = arith.cmpi sle, %3, %6 : vector<16x32xi32>
    %c32_i32_2 = arith.constant 32 : i32
    %8 = vector.broadcast %c32_i32_2 : i32 to vector<16x32xi32>
    %9 = arith.addi %3, %8 : vector<16x32xi32>
    %10 = arith.cmpi slt, %6, %9 : vector<16x32xi32>
    %11 = arith.andi %7, %10 : vector<16x32xi1>
    %12 = arith.extui %11 : vector<16x32xi1> to vector<16x32xi32>
    %13 = arith.sitofp %12 : vector<16x32xi32> to vector<16x32xf32>
    %14 = vector.shape_cast %0 : vector<8x16x16xf32> to vector<128x16xf32>
    %cst = arith.constant dense<0.000000e+00> : vector<128x32xf32>
    %15 = tpu.matmul %14, %13, %cst {dimension_numbers = #tpu.dot_dimension_numbers<[1], [0], [0], [1], [0, 0, 1, 1], [], []>} : vector<128x16xf32>, vector<16x32xf32>, vector<128x32xf32> -> vector<128x32xf32>
    %16 = vector.shape_cast %15 : vector<128x32xf32> to vector<8x16x32xf32>
    %17 = vector.extract_strided_slice %16 {offsets = [0, 0, 0], sizes = [8, 1, 32], strides = [1, 1, 1]} : vector<8x16x32xf32> to vector<8x1x32xf32>
    %18 = vector.shape_cast %17 : vector<8x1x32xf32> to vector<8x1x32xf32>
    %19 = vector.broadcast %18 : vector<8x1x32xf32> to vector<8x2x32xf32>
    %c0_3 = arith.constant 0 : index
    %c0_4 = arith.constant 0 : index
    %c0_5 = arith.constant 0 : index
    %20 = vector.load %arg2[%c0_3, %c0_4, %c0_5] : memref<8x32x32xf32, #tpu.memory_space<vmem>>, vector<8x2x32xf32>
    tpu.vector_store %arg2[%c0_3, %c0_4, %c0_5], %19 {strides = array<i32>} : memref<8x32x32xf32, #tpu.memory_space<vmem>>, vector<8x2x32xf32>,
    %21 = vector.extract_strided_slice %16 {offsets = [0, 1, 0], sizes = [8, 1, 32], strides = [1, 1, 1]} : vector<8x16x32xf32> to vector<8x1x32xf32>
    %22 = vector.shape_cast %21 : vector<8x1x32xf32> to vector<8x1x32xf32>
    %23 = vector.broadcast %22 : vector<8x1x32xf32> to vector<8x2x32xf32>
    %c0_6 = arith.constant 0 : index
    %c2 = arith.constant 2 : index
    %c0_7 = arith.constant 0 : index
    %24 = vector.load %arg2[%c0_6, %c2, %c0_7] : memref<8x32x32xf32, #tpu.memory_space<vmem>>, vector<8x2x32xf32>
    tpu.vector_store %arg2[%c0_6, %c2, %c0_7], %23 {strides = array<i32>} : memref<8x32x32xf32, #tpu.memory_space<vmem>>, vector<8x2x32xf32>,
    %25 = vector.extract_strided_slice %16 {offsets = [0, 2, 0], sizes = [8, 1, 32], strides = [1, 1, 1]} : vector<8x16x32xf32> to vector<8x1x32xf32>
    %26 = vector.shape_cast %25 : vector<8x1x32xf32> to vector<8x1x32xf32>
    %27 = vector.broadcast %26 : vector<8x1x32xf32> to vector<8x2x32xf32>
    %c0_8 = arith.constant 0 : index
    %c4 = arith.constant 4 : index
    %c0_9 = arith.constant 0 : index
    %28 = vector.load %arg2[%c0_8, %c4, %c0_9] : memref<8x32x32xf32, #tpu.memory_space<vmem>>, vector<8x2x32xf32>
    tpu.vector_store %arg2[%c0_8, %c4, %c0_9], %27 {strides = array<i32>} : memref<8x32x32xf32, #tpu.memory_space<vmem>>, vector<8x2x32xf32>,
    %29 = vector.extract_strided_slice %16 {offsets = [0, 3, 0], sizes = [8, 1, 32], strides = [1, 1, 1]} : vector<8x16x32xf32> to vector<8x1x32xf32>
    %30 = vector.shape_cast %29 : vector<8x1x32xf32> to vector<8x1x32xf32>
    %31 = vector.broadcast %30 : vector<8x1x32xf32> to vector<8x2x32xf32>
    %c0_10 = arith.constant 0 : index
    %c6 = arith.constant 6 : index
    %c0_11 = arith.constant 0 : index
    %32 = vector.load %arg2[%c0_10, %c6, %c0_11] : memref<8x32x32xf32, #tpu.memory_space<vmem>>, vector<8x2x32xf32>
    tpu.vector_store %arg2[%c0_10, %c6, %c0_11], %31 {strides = array<i32>} : memref<8x32x32xf32, #tpu.memory_space<vmem>>, vector<8x2x32xf32>,
    %33 = vector.extract_strided_slice %16 {offsets = [0, 4, 0], sizes = [8, 1, 32], strides = [1, 1, 1]} : vector<8x16x32xf32> to vector<8x1x32xf32>
    %34 = vector.shape_cast %33 : vector<8x1x32xf32> to vector<8x1x32xf32>
    %35 = vector.broadcast %34 : vector<8x1x32xf32> to vector<8x2x32xf32>
    %c0_12 = arith.constant 0 : index
    %c8 = arith.constant 8 : index
    %c0_13 = arith.constant 0 : index
    %36 = vector.load %arg2[%c0_12, %c8, %c0_13] : memref<8x32x32xf32, #tpu.memory_space<vmem>>, vector<8x2x32xf32>
    tpu.vector_store %arg2[%c0_12, %c8, %c0_13], %35 {strides = array<i32>} : memref<8x32x32xf32, #tpu.memory_space<vmem>>, vector<8x2x32xf32>,
    %37 = vector.extract_strided_slice %16 {offsets = [0, 5, 0], sizes = [8, 1, 32], strides = [1, 1, 1]} : vector<8x16x32xf32> to vector<8x1x32xf32>
    %38 = vector.shape_cast %37 : vector<8x1x32xf32> to vector<8x1x32xf32>
    %39 = vector.broadcast %38 : vector<8x1x32xf32> to vector<8x2x32xf32>
    %c0_14 = arith.constant 0 : index
    %c10 = arith.constant 10 : index
    %c0_15 = arith.constant 0 : index
    %40 = vector.load %arg2[%c0_14, %c10, %c0_15] : memref<8x32x32xf32, #tpu.memory_space<vmem>>, vector<8x2x32xf32>
    tpu.vector_store %arg2[%c0_14, %c10, %c0_15], %39 {strides = array<i32>} : memref<8x32x32xf32, #tpu.memory_space<vmem>>, vector<8x2x32xf32>,
    %41 = vector.extract_strided_slice %16 {offsets = [0, 6, 0], sizes = [8, 1, 32], strides = [1, 1, 1]} : vector<8x16x32xf32> to vector<8x1x32xf32>
    %42 = vector.shape_cast %41 : vector<8x1x32xf32> to vector<8x1x32xf32>
    %43 = vector.broadcast %42 : vector<8x1x32xf32> to vector<8x2x32xf32>
    %c0_16 = arith.constant 0 : index
    %c12 = arith.constant 12 : index
    %c0_17 = arith.constant 0 : index
    %44 = vector.load %arg2[%c0_16, %c12, %c0_17] : memref<8x32x32xf32, #tpu.memory_space<vmem>>, vector<8x2x32xf32>
    tpu.vector_store %arg2[%c0_16, %c12, %c0_17], %43 {strides = array<i32>} : memref<8x32x32xf32, #tpu.memory_space<vmem>>, vector<8x2x32xf32>,
    %45 = vector.extract_strided_slice %16 {offsets = [0, 7, 0], sizes = [8, 1, 32], strides = [1, 1, 1]} : vector<8x16x32xf32> to vector<8x1x32xf32>
    %46 = vector.shape_cast %45 : vector<8x1x32xf32> to vector<8x1x32xf32>
    %47 = vector.broadcast %46 : vector<8x1x32xf32> to vector<8x2x32xf32>
    %c0_18 = arith.constant 0 : index
    %c14 = arith.constant 14 : index
    %c0_19 = arith.constant 0 : index
    %48 = vector.load %arg2[%c0_18, %c14, %c0_19] : memref<8x32x32xf32, #tpu.memory_space<vmem>>, vector<8x2x32xf32>
    tpu.vector_store %arg2[%c0_18, %c14, %c0_19], %47 {strides = array<i32>} : memref<8x32x32xf32, #tpu.memory_space<vmem>>, vector<8x2x32xf32>,
    %49 = vector.extract_strided_slice %16 {offsets = [0, 8, 0], sizes = [8, 1, 32], strides = [1, 1, 1]} : vector<8x16x32xf32> to vector<8x1x32xf32>
    %50 = vector.shape_cast %49 : vector<8x1x32xf32> to vector<8x1x32xf32>
    %51 = vector.broadcast %50 : vector<8x1x32xf32> to vector<8x2x32xf32>
    %c0_20 = arith.constant 0 : index
    %c16 = arith.constant 16 : index
    %c0_21 = arith.constant 0 : index
    %52 = vector.load %arg2[%c0_20, %c16, %c0_21] : memref<8x32x32xf32, #tpu.memory_space<vmem>>, vector<8x2x32xf32>
    tpu.vector_store %arg2[%c0_20, %c16, %c0_21], %51 {strides = array<i32>} : memref<8x32x32xf32, #tpu.memory_space<vmem>>, vector<8x2x32xf32>,
    %53 = vector.extract_strided_slice %16 {offsets = [0, 9, 0], sizes = [8, 1, 32], strides = [1, 1, 1]} : vector<8x16x32xf32> to vector<8x1x32xf32>
    %54 = vector.shape_cast %53 : vector<8x1x32xf32> to vector<8x1x32xf32>
    %55 = vector.broadcast %54 : vector<8x1x32xf32> to vector<8x2x32xf32>
    %c0_22 = arith.constant 0 : index
    %c18 = arith.constant 18 : index
    %c0_23 = arith.constant 0 : index
    %56 = vector.load %arg2[%c0_22, %c18, %c0_23] : memref<8x32x32xf32, #tpu.memory_space<vmem>>, vector<8x2x32xf32>
    tpu.vector_store %arg2[%c0_22, %c18, %c0_23], %55 {strides = array<i32>} : memref<8x32x32xf32, #tpu.memory_space<vmem>>, vector<8x2x32xf32>,
    %57 = vector.extract_strided_slice %16 {offsets = [0, 10, 0], sizes = [8, 1, 32], strides = [1, 1, 1]} : vector<8x16x32xf32> to vector<8x1x32xf32>
    %58 = vector.shape_cast %57 : vector<8x1x32xf32> to vector<8x1x32xf32>
    %59 = vector.broadcast %58 : vector<8x1x32xf32> to vector<8x2x32xf32>
    %c0_24 = arith.constant 0 : index
    %c20 = arith.constant 20 : index
    %c0_25 = arith.constant 0 : index
    %60 = vector.load %arg2[%c0_24, %c20, %c0_25] : memref<8x32x32xf32, #tpu.memory_space<vmem>>, vector<8x2x32xf32>
    tpu.vector_store %arg2[%c0_24, %c20, %c0_25], %59 {strides = array<i32>} : memref<8x32x32xf32, #tpu.memory_space<vmem>>, vector<8x2x32xf32>,
    %61 = vector.extract_strided_slice %16 {offsets = [0, 11, 0], sizes = [8, 1, 32], strides = [1, 1, 1]} : vector<8x16x32xf32> to vector<8x1x32xf32>
    %62 = vector.shape_cast %61 : vector<8x1x32xf32> to vector<8x1x32xf32>
    %63 = vector.broadcast %62 : vector<8x1x32xf32> to vector<8x2x32xf32>
    %c0_26 = arith.constant 0 : index
    %c22 = arith.constant 22 : index
    %c0_27 = arith.constant 0 : index
    %64 = vector.load %arg2[%c0_26, %c22, %c0_27] : memref<8x32x32xf32, #tpu.memory_space<vmem>>, vector<8x2x32xf32>
    tpu.vector_store %arg2[%c0_26, %c22, %c0_27], %63 {strides = array<i32>} : memref<8x32x32xf32, #tpu.memory_space<vmem>>, vector<8x2x32xf32>,
    %65 = vector.extract_strided_slice %16 {offsets = [0, 12, 0], sizes = [8, 1, 32], strides = [1, 1, 1]} : vector<8x16x32xf32> to vector<8x1x32xf32>
    %66 = vector.shape_cast %65 : vector<8x1x32xf32> to vector<8x1x32xf32>
    %67 = vector.broadcast %66 : vector<8x1x32xf32> to vector<8x2x32xf32>
    %c0_28 = arith.constant 0 : index
    %c24 = arith.constant 24 : index
    %c0_29 = arith.constant 0 : index
    %68 = vector.load %arg2[%c0_28, %c24, %c0_29] : memref<8x32x32xf32, #tpu.memory_space<vmem>>, vector<8x2x32xf32>
    tpu.vector_store %arg2[%c0_28, %c24, %c0_29], %67 {strides = array<i32>} : memref<8x32x32xf32, #tpu.memory_space<vmem>>, vector<8x2x32xf32>,
    %69 = vector.extract_strided_slice %16 {offsets = [0, 13, 0], sizes = [8, 1, 32], strides = [1, 1, 1]} : vector<8x16x32xf32> to vector<8x1x32xf32>
    %70 = vector.shape_cast %69 : vector<8x1x32xf32> to vector<8x1x32xf32>
    %71 = vector.broadcast %70 : vector<8x1x32xf32> to vector<8x2x32xf32>
    %c0_30 = arith.constant 0 : index
    %c26 = arith.constant 26 : index
    %c0_31 = arith.constant 0 : index
    %72 = vector.load %arg2[%c0_30, %c26, %c0_31] : memref<8x32x32xf32, #tpu.memory_space<vmem>>, vector<8x2x32xf32>
    tpu.vector_store %arg2[%c0_30, %c26, %c0_31], %71 {strides = array<i32>} : memref<8x32x32xf32, #tpu.memory_space<vmem>>, vector<8x2x32xf32>,
    %73 = vector.extract_strided_slice %16 {offsets = [0, 14, 0], sizes = [8, 1, 32], strides = [1, 1, 1]} : vector<8x16x32xf32> to vector<8x1x32xf32>
    %74 = vector.shape_cast %73 : vector<8x1x32xf32> to vector<8x1x32xf32>
    %75 = vector.broadcast %74 : vector<8x1x32xf32> to vector<8x2x32xf32>
    %c0_32 = arith.constant 0 : index
    %c28 = arith.constant 28 : index
    %c0_33 = arith.constant 0 : index
    %76 = vector.load %arg2[%c0_32, %c28, %c0_33] : memref<8x32x32xf32, #tpu.memory_space<vmem>>, vector<8x2x32xf32>
    tpu.vector_store %arg2[%c0_32, %c28, %c0_33], %75 {strides = array<i32>} : memref<8x32x32xf32, #tpu.memory_space<vmem>>, vector<8x2x32xf32>,
    %77 = vector.extract_strided_slice %16 {offsets = [0, 15, 0], sizes = [8, 1, 32], strides = [1, 1, 1]} : vector<8x16x32xf32> to vector<8x1x32xf32>
    %78 = vector.shape_cast %77 : vector<8x1x32xf32> to vector<8x1x32xf32>
    %79 = vector.broadcast %78 : vector<8x1x32xf32> to vector<8x2x32xf32>
    %c0_34 = arith.constant 0 : index
    %c30 = arith.constant 30 : index
    %c0_35 = arith.constant 0 : index
    %80 = vector.load %arg2[%c0_34, %c30, %c0_35] : memref<8x32x32xf32, #tpu.memory_space<vmem>>, vector<8x2x32xf32>
    tpu.vector_store %arg2[%c0_34, %c30, %c0_35], %79 {strides = array<i32>} : memref<8x32x32xf32, #tpu.memory_space<vmem>>, vector<8x2x32xf32>,
    return
  }
  func.func @transform_0(%arg0: i32) -> (i32, i32, i32) {
    %c0_i32 = arith.constant 0 : i32
    %c0_i32_0 = arith.constant 0 : i32
    %c0_i32_1 = arith.constant 0 : i32
    return %arg0, %c0_i32, %c0_i32_0 : i32, i32, i32
  }
  func.func @transform_1(%arg0: i32) -> (i32, i32, i32) {
    %c0_i32 = arith.constant 0 : i32
    %c0_i32_0 = arith.constant 0 : i32
    %c0_i32_1 = arith.constant 0 : i32
    return %arg0, %c0_i32, %c0_i32_0 : i32, i32, i32
  }
}

</mosaic_0001>

<llo_original>
// kernel: tpu_custom_call.1
$region0: #{tpu_custom_call.1}
  #allocation0 [shape = 'u32[]', space=smem, size = 0x4, offset = 0x4, fixed_abs, tag = 'smem constant byte address 0x4 - core index']
  #allocation1 [shape = 'u32[144,128]{1,0:T(1,128)}', space=vmem, size = 0x12000, scoped, tag = 'internal scratch']
  %s0 = inlined_call_operand.hbm [shape: f32[8,16,16], index: 0, kind: input, shape index: {}]
  %s1 = inlined_call_operand.hbm [shape: f32[8,32,32], index: 1, kind: output, shape index: {}]
  %s2 = sld [smem:[#allocation0]]
  $region18: #{tpu_custom_call.1} parent=0
    _
  %s4 = ssub.s32 1, %s2
  %s5 = scalar_select 0, %s4, %s2
  $region1: #{tpu_custom_call.1} parent=0
    #allocation2 [shape = 'u8[65536]{0}', space=vmem, size = 0x10000, scoped, tag = 'input window, operand 0, single buffered']
    #allocation3 [shape = 's32[1]{0}', space=sflag, size = 0x4, scoped, tag = 'scoped memory for tpu_custom_call.1']
    #allocation4 [shape = 's32[1]{0}', space=sflag, size = 0x4, scoped, tag = 'scoped memory for tpu_custom_call.1']
    #allocation5 [shape = 'u8[131072]{0}', space=vmem, size = 0x20000, scoped, tag = 'output window, operand 0, single buffered']
    %6 = vsyncpa [#allocation3], 0
    %7 = vsyncpa [#allocation4], 0
    // Predicated region
    $region2: #{tpu_custom_call.1} parent=1 // pred_check
      _
    $region3: #{tpu_custom_call.1} parent=1 // pred_check_branch
      %9 = sbr.rel (0) target = $region5
    $region4: #{tpu_custom_call.1} parent=1 // pred_region
      %s11 = ssub.s32 2048, 2048
      %12 = vsyncadd [#allocation3], %s11
      %s13 = sshll.u32 [#allocation2], 4
      %s14 = int_to_ptr.vmem [resolvable:$true] %s13
      %19 = dma.hbm_to_vmem [thread:$0]  %s0, 2048, %s14, [#allocation3], 128, 128, 8
    $region5: #{tpu_custom_call.1} parent=1 // pred_fallthru
      _
    // Predicated region
    $region6: #{tpu_custom_call.1} parent=1 // pred_check
      _
    $region7: #{tpu_custom_call.1} parent=1 // pred_check_branch
      %21 = sbr.rel (0) target = $region9
    $region8: #{tpu_custom_call.1} parent=1 // pred_region
      %22 = dma.done [#allocation3], 2048
    $region9: #{tpu_custom_call.1} parent=1 // pred_fallthru
      _
    %v23 = vld [vmem:[#allocation2] sm:$0xff]
    %v24 = vld [vmem:[#allocation2 + $0x8] sm:$0xff]
    %v25 = vld [vmem:[#allocation2 + $0x10] sm:$0xff]
    %v26 = vld [vmem:[#allocation2 + $0x18] sm:$0xff]
    %v27 = vld [vmem:[#allocation2 + $0x20] sm:$0xff]
    %v28 = vld [vmem:[#allocation2 + $0x28] sm:$0xff]
    %v29 = vld [vmem:[#allocation2 + $0x30] sm:$0xff]
    %v30 = vld [vmem:[#allocation2 + $0x38] sm:$0xff]
    %v31 = vld [vmem:[#allocation2 + $0x40] sm:$0xff]
    %v32 = vld [vmem:[#allocation2 + $0x48] sm:$0xff]
    %v33 = vld [vmem:[#allocation2 + $0x50] sm:$0xff]
    %v34 = vld [vmem:[#allocation2 + $0x58] sm:$0xff]
    %v35 = vld [vmem:[#allocation2 + $0x60] sm:$0xff]
    %v36 = vld [vmem:[#allocation2 + $0x68] sm:$0xff]
    %v37 = vld [vmem:[#allocation2 + $0x70] sm:$0xff]
    %v38 = vld [vmem:[#allocation2 + $0x78] sm:$0xff]
    %v39 = vlaneseq
    %v40 = vshrl.u32 %v39, 7
    %v41 = vadd.s32 %v40, 8
    %v42 = vmul.u32 %v40, 32
    %v43 = vmul.u32 %v41, 32
    %v44 = vlaneseq
    %v45 = vand.u32 %v44, 127
    %v46 = vmul.u32 %v45, 16
    %vm47 = vcmp.le.s32.totalorder %v42, %v46
    %vm48 = vcmp.le.s32.totalorder %v43, %v46
    %v49 = vadd.s32 %v42, 32
    %v50 = vadd.s32 %v43, 32
    %vm51 = vcmp.lt.s32.totalorder %v46, %v49
    %vm52 = vcmp.lt.s32.totalorder %v46, %v50
    %vm53 = vmand %vm47, %vm51
    %vm54 = vmand %vm48, %vm52
    %v55 = vsel %vm53, 1, 0
    %v56 = vsel %vm54, 1, 0
    %v57 = vcvt.s32.f32 %v55
    %v58 = vcvt.s32.f32 %v56
    %vm59 = vcmask 130048
    %v61 = vsel %vm59, %v23, 0
    %v64 = vsel %vm59, %v24, 0
    %v67 = vsel %vm59, %v25, 0
    %v70 = vsel %vm59, %v26, 0
    %v73 = vsel %vm59, %v27, 0
    %v76 = vsel %vm59, %v28, 0
    %v79 = vsel %vm59, %v29, 0
    %v82 = vsel %vm59, %v30, 0
    %v85 = vsel %vm59, %v31, 0
    %v88 = vsel %vm59, %v32, 0
    %v91 = vsel %vm59, %v33, 0
    %v94 = vsel %vm59, %v34, 0
    %v97 = vsel %vm59, %v35, 0
    %v100 = vsel %vm59, %v36, 0
    %v103 = vsel %vm59, %v37, 0
    %v106 = vsel %vm59, %v38, 0
    %108 = vmatprep.subr.mxu0 0.0
    %109 = vmatpush1.msra.mxu0 %v57
    %110 = vmatprep.subr.mxu0 0.0
    %111 = vmatpush1.msra.mxu0 %v58
    %112 = vmatprep.subr.mxu0 0.0
    %113 = vmatpush1.msra.mxu0 0.0
    %114 = vmatprep.subr.mxu0 0.0
    %115 = vmatpush1.msra.mxu0 0.0
    %116 = vmatprep.subr.mxu0 0.0
    %117 = vmatpush1.msra.mxu0 0.0
    %118 = vmatprep.subr.mxu0 0.0
    %119 = vmatpush1.msra.mxu0 0.0
    %120 = vmatprep.subr.mxu0 0.0
    %121 = vmatpush1.msra.mxu0 0.0
    %122 = vmatprep.subr.mxu0 0.0
    %123 = vmatpush1.msra.mxu0 0.0
    %124 = vmatprep.subr.mxu0 0.0
    %125 = vmatpush1.msra.mxu0 0.0
    %126 = vmatprep.subr.mxu0 0.0
    %127 = vmatpush1.msra.mxu0 0.0
    %128 = vmatprep.subr.mxu0 0.0
    %129 = vmatpush1.msra.mxu0 0.0
    %130 = vmatprep.subr.mxu0 0.0
    %131 = vmatpush1.msra.mxu0 0.0
    %132 = vmatprep.subr.mxu0 0.0
    %133 = vmatpush1.msra.mxu0 0.0
    %134 = vmatprep.subr.mxu0 0.0
    %135 = vmatpush1.msra.mxu0 0.0
    %136 = vmatprep.subr.mxu0 0.0
    %137 = vmatpush1.msra.mxu0 0.0
    %138 = vmatprep.subr.mxu0 0.0
    %139 = vmatpush1.msra.mxu0 0.0
    %140 = vmatprep.subr.mxu0 0.0
    %141 = vmatpush1.msra.mxu0 0.0
    %142 = vmatprep.subr.mxu0 0.0
    %143 = vmatpush1.msra.mxu0 0.0
    %144 = vmatprep.subr.mxu0 0.0
    %145 = vmatpush1.msra.mxu0 0.0
    %146 = vmatprep.subr.mxu0 0.0
    %147 = vmatpush1.msra.mxu0 0.0
    %148 = vmatprep.subr.mxu0 0.0
    %149 = vmatpush1.msra.mxu0 0.0
    %150 = vmatprep.subr.mxu0 0.0
    %151 = vmatpush1.msra.mxu0 0.0
    %152 = vmatprep.subr.mxu0 0.0
    %153 = vmatpush1.msra.mxu0 0.0
    %154 = vmatprep.subr.mxu0 0.0
    %155 = vmatpush1.msra.mxu0 0.0
    %156 = vmatprep.subr.mxu0 0.0
    %157 = vmatpush1.msra.mxu0 0.0
    %158 = vmatprep.subr.mxu0 0.0
    %159 = vmatpush1.msra.mxu0 0.0
    %160 = vmatprep.subr.mxu0 0.0
    %161 = vmatpush1.msra.mxu0 0.0
    %162 = vmatprep.subr.mxu0 0.0
    %163 = vmatpush1.msra.mxu0 0.0
    %164 = vmatprep.subr.mxu0 0.0
    %165 = vmatpush1.msra.mxu0 0.0
    %166 = vmatprep.subr.mxu0 0.0
    %167 = vmatpush1.msra.mxu0 0.0
    %168 = vmatprep.subr.mxu0 0.0
    %169 = vmatpush1.msra.mxu0 0.0
    %170 = vmatprep.subr.mxu0 0.0
    %171 = vmatpush1.msra.mxu0 0.0
    %172 = vmatprep.mubr.f32.mxu0 0.0
    %173 = vmatmul.mubr.f32.gmra.mrb[0].mxu0 %v61
    %v174 = vpop.f32.mrb[0].mxu0
    %v175 = vadd.f32 0.0, %v174
    %v176 = vpop.f32.mrb[0].mxu0
    %177 = vmatprep.mubr.f32.mxu0 0.0
    %178 = vmatmul.mubr.f32.gmra.mrb[0].mxu0 %v64
    %v179 = vpop.f32.mrb[0].mxu0
    %v180 = vadd.f32 0.0, %v179
    %v181 = vpop.f32.mrb[0].mxu0
    %182 = vmatprep.mubr.f32.mxu0 0.0
    %183 = vmatmul.mubr.f32.gmra.mrb[0].mxu0 %v67
    %v184 = vpop.f32.mrb[0].mxu0
    %v185 = vadd.f32 0.0, %v184
    %v186 = vpop.f32.mrb[0].mxu0
    %187 = vmatprep.mubr.f32.mxu0 0.0
    %188 = vmatmul.mubr.f32.gmra.mrb[0].mxu0 %v70
    %v189 = vpop.f32.mrb[0].mxu0
    %v190 = vadd.f32 0.0, %v189
    %v191 = vpop.f32.mrb[0].mxu0
    %192 = vmatprep.mubr.f32.mxu0 0.0
    %193 = vmatmul.mubr.f32.gmra.mrb[0].mxu0 %v73
    %v194 = vpop.f32.mrb[0].mxu0
    %v195 = vadd.f32 0.0, %v194
    %v196 = vpop.f32.mrb[0].mxu0
    %197 = vmatprep.mubr.f32.mxu0 0.0
    %198 = vmatmul.mubr.f32.gmra.mrb[0].mxu0 %v76
    %v199 = vpop.f32.mrb[0].mxu0
    %v200 = vadd.f32 0.0, %v199
    %v201 = vpop.f32.mrb[0].mxu0
    %202 = vmatprep.mubr.f32.mxu0 0.0
    %203 = vmatmul.mubr.f32.gmra.mrb[0].mxu0 %v79
    %v204 = vpop.f32.mrb[0].mxu0
    %v205 = vadd.f32 0.0, %v204
    %v206 = vpop.f32.mrb[0].mxu0
    %207 = vmatprep.mubr.f32.mxu0 0.0
    %208 = vmatmul.mubr.f32.gmra.mrb[0].mxu0 %v82
    %v209 = vpop.f32.mrb[0].mxu0
    %v210 = vadd.f32 0.0, %v209
    %v211 = vpop.f32.mrb[0].mxu0
    %212 = vmatprep.mubr.f32.mxu0 0.0
    %213 = vmatmul.mubr.f32.gmra.mrb[0].mxu0 %v85
    %v214 = vpop.f32.mrb[0].mxu0
    %v215 = vadd.f32 0.0, %v214
    %v216 = vpop.f32.mrb[0].mxu0
    %217 = vmatprep.mubr.f32.mxu0 0.0
    %218 = vmatmul.mubr.f32.gmra.mrb[0].mxu0 %v88
    %v219 = vpop.f32.mrb[0].mxu0
    %v220 = vadd.f32 0.0, %v219
    %v221 = vpop.f32.mrb[0].mxu0
    %222 = vmatprep.mubr.f32.mxu0 0.0
    %223 = vmatmul.mubr.f32.gmra.mrb[0].mxu0 %v91
    %v224 = vpop.f32.mrb[0].mxu0
    %v225 = vadd.f32 0.0, %v224
    %v226 = vpop.f32.mrb[0].mxu0
    %227 = vmatprep.mubr.f32.mxu0 0.0
    %228 = vmatmul.mubr.f32.gmra.mrb[0].mxu0 %v94
    %v229 = vpop.f32.mrb[0].mxu0
    %v230 = vadd.f32 0.0, %v229
    %v231 = vpop.f32.mrb[0].mxu0
    %232 = vmatprep.mubr.f32.mxu0 0.0
    %233 = vmatmul.mubr.f32.gmra.mrb[0].mxu0 %v97
    %v234 = vpop.f32.mrb[0].mxu0
    %v235 = vadd.f32 0.0, %v234
    %v236 = vpop.f32.mrb[0].mxu0
    %237 = vmatprep.mubr.f32.mxu0 0.0
    %238 = vmatmul.mubr.f32.gmra.mrb[0].mxu0 %v100
    %v239 = vpop.f32.mrb[0].mxu0
    %v240 = vadd.f32 0.0, %v239
    %v241 = vpop.f32.mrb[0].mxu0
    %242 = vmatprep.mubr.f32.mxu0 0.0
    %243 = vmatmul.mubr.f32.gmra.mrb[0].mxu0 %v103
    %v244 = vpop.f32.mrb[0].mxu0
    %v245 = vadd.f32 0.0, %v244
    %v246 = vpop.f32.mrb[0].mxu0
    %247 = vmatprep.mubr.f32.mxu0 0.0
    %248 = vmatmul.mubr.f32.gmra.mrb[0].mxu0 %v106
    %v249 = vpop.f32.mrb[0].mxu0
    %v250 = vadd.f32 0.0, %v249
    %v251 = vpop.f32.mrb[0].mxu0
    %252 = vdwg.mxu0
    %v253 = vlaneseq
    %v254 = vshrl.u32 %v253, 7
    %v255 = vsub.s32 0, %v254
    %v256 = vrot.slane %v175, %v255
    %v257 = vlaneseq
    %v258 = vshrl.u32 %v257, 7
    %v259 = vsub.s32 0, %v258
    %v260 = vrot.slane %v185, %v259
    %v261 = vlaneseq
    %v262 = vshrl.u32 %v261, 7
    %v263 = vsub.s32 0, %v262
    %v264 = vrot.slane %v195, %v263
    %v265 = vlaneseq
    %v266 = vshrl.u32 %v265, 7
    %v267 = vsub.s32 0, %v266
    %v268 = vrot.slane %v205, %v267
    %v269 = vlaneseq
    %v270 = vshrl.u32 %v269, 7
    %v271 = vsub.s32 0, %v270
    %v272 = vrot.slane %v215, %v271
    %v273 = vlaneseq
    %v274 = vshrl.u32 %v273, 7
    %v275 = vsub.s32 0, %v274
    %v276 = vrot.slane %v225, %v275
    %v277 = vlaneseq
    %v278 = vshrl.u32 %v277, 7
    %v279 = vsub.s32 0, %v278
    %v280 = vrot.slane %v235, %v279
    %v281 = vlaneseq
    %v282 = vshrl.u32 %v281, 7
    %v283 = vsub.s32 0, %v282
    %v284 = vrot.slane %v245, %v283
    %vm285 = vcmask 254976
    %286 = vst.msk [vmem:[#allocation5] sm:$0x3] %vm285, %v256
    %287 = vst.msk [vmem:[#allocation5 + $0x20] sm:$0x3] %vm285, %v260
    %288 = vst.msk [vmem:[#allocation5 + $0x40] sm:$0x3] %vm285, %v264
    %289 = vst.msk [vmem:[#allocation5 + $0x60] sm:$0x3] %vm285, %v268
    %290 = vst.msk [vmem:[#allocation5 + $0x80] sm:$0x3] %vm285, %v272
    %291 = vst.msk [vmem:[#allocation5 + $0xa0] sm:$0x3] %vm285, %v276
    %292 = vst.msk [vmem:[#allocation5 + $0xc0] sm:$0x3] %vm285, %v280
    %293 = vst.msk [vmem:[#allocation5 + $0xe0] sm:$0x3] %vm285, %v284
    %v294 = vlaneseq
    %v295 = vshrl.u32 %v294, 7
    %v296 = vsub.s32 1, %v295
    %v297 = vrot.slane %v175, %v296
    %v298 = vlaneseq
    %v299 = vshrl.u32 %v298, 7
    %v300 = vsub.s32 1, %v299
    %v301 = vrot.slane %v185, %v300
    %v302 = vlaneseq
    %v303 = vshrl.u32 %v302, 7
    %v304 = vsub.s32 1, %v303
    %v305 = vrot.slane %v195, %v304
    %v306 = vlaneseq
    %v307 = vshrl.u32 %v306, 7
    %v308 = vsub.s32 1, %v307
    %v309 = vrot.slane %v205, %v308
    %v310 = vlaneseq
    %v311 = vshrl.u32 %v310, 7
    %v312 = vsub.s32 1, %v311
    %v313 = vrot.slane %v215, %v312
    %v314 = vlaneseq
    %v315 = vshrl.u32 %v314, 7
    %v316 = vsub.s32 1, %v315
    %v317 = vrot.slane %v225, %v316
    %v318 = vlaneseq
    %v319 = vshrl.u32 %v318, 7
    %v320 = vsub.s32 1, %v319
    %v321 = vrot.slane %v235, %v320
    %v322 = vlaneseq
    %v323 = vshrl.u32 %v322, 7
    %v324 = vsub.s32 1, %v323
    %v325 = vrot.slane %v245, %v324
    %326 = vst.msk [vmem:[#allocation5 + $0x2] sm:$0x3] %vm285, %v297
    %327 = vst.msk [vmem:[#allocation5 + $0x22] sm:$0x3] %vm285, %v301
    %328 = vst.msk [vmem:[#allocation5 + $0x42] sm:$0x3] %vm285, %v305
    %329 = vst.msk [vmem:[#allocation5 + $0x62] sm:$0x3] %vm285, %v309
    %330 = vst.msk [vmem:[#allocation5 + $0x82] sm:$0x3] %vm285, %v313
    %331 = vst.msk [vmem:[#allocation5 + $0xa2] sm:$0x3] %vm285, %v317
    %332 = vst.msk [vmem:[#allocation5 + $0xc2] sm:$0x3] %vm285, %v321
    %333 = vst.msk [vmem:[#allocation5 + $0xe2] sm:$0x3] %vm285, %v325
    %v334 = vlaneseq
    %v335 = vshrl.u32 %v334, 7
    %v336 = vsub.s32 2, %v335
    %v337 = vrot.slane %v175, %v336
    %v338 = vlaneseq
    %v339 = vshrl.u32 %v338, 7
    %v340 = vsub.s32 2, %v339
    %v341 = vrot.slane %v185, %v340
    %v342 = vlaneseq
    %v343 = vshrl.u32 %v342, 7
    %v344 = vsub.s32 2, %v343
    %v345 = vrot.slane %v195, %v344
    %v346 = vlaneseq
    %v347 = vshrl.u32 %v346, 7
    %v348 = vsub.s32 2, %v347
    %v349 = vrot.slane %v205, %v348
    %v350 = vlaneseq
    %v351 = vshrl.u32 %v350, 7
    %v352 = vsub.s32 2, %v351
    %v353 = vrot.slane %v215, %v352
    %v354 = vlaneseq
    %v355 = vshrl.u32 %v354, 7
    %v356 = vsub.s32 2, %v355
    %v357 = vrot.slane %v225, %v356
    %v358 = vlaneseq
    %v359 = vshrl.u32 %v358, 7
    %v360 = vsub.s32 2, %v359
    %v361 = vrot.slane %v235, %v360
    %v362 = vlaneseq
    %v363 = vshrl.u32 %v362, 7
    %v364 = vsub.s32 2, %v363
    %v365 = vrot.slane %v245, %v364
    %366 = vst.msk [vmem:[#allocation5 + $0x4] sm:$0x3] %vm285, %v337
    %367 = vst.msk [vmem:[#allocation5 + $0x24] sm:$0x3] %vm285, %v341
    %368 = vst.msk [vmem:[#allocation5 + $0x44] sm:$0x3] %vm285, %v345
    %369 = vst.msk [vmem:[#allocation5 + $0x64] sm:$0x3] %vm285, %v349
    %370 = vst.msk [vmem:[#allocation5 + $0x84] sm:$0x3] %vm285, %v353
    %371 = vst.msk [vmem:[#allocation5 + $0xa4] sm:$0x3] %vm285, %v357
    %372 = vst.msk [vmem:[#allocation5 + $0xc4] sm:$0x3] %vm285, %v361
    %373 = vst.msk [vmem:[#allocation5 + $0xe4] sm:$0x3] %vm285, %v365
    %v374 = vlaneseq
    %v375 = vshrl.u32 %v374, 7
    %v376 = vsub.s32 3, %v375
    %v377 = vrot.slane %v175, %v376
    %v378 = vlaneseq
    %v379 = vshrl.u32 %v378, 7
    %v380 = vsub.s32 3, %v379
    %v381 = vrot.slane %v185, %v380
    %v382 = vlaneseq
    %v383 = vshrl.u32 %v382, 7
    %v384 = vsub.s32 3, %v383
    %v385 = vrot.slane %v195, %v384
    %v386 = vlaneseq
    %v387 = vshrl.u32 %v386, 7
    %v388 = vsub.s32 3, %v387
    %v389 = vrot.slane %v205, %v388
    %v390 = vlaneseq
    %v391 = vshrl.u32 %v390, 7
    %v392 = vsub.s32 3, %v391
    %v393 = vrot.slane %v215, %v392
    %v394 = vlaneseq
    %v395 = vshrl.u32 %v394, 7
    %v396 = vsub.s32 3, %v395
    %v397 = vrot.slane %v225, %v396
    %v398 = vlaneseq
    %v399 = vshrl.u32 %v398, 7
    %v400 = vsub.s32 3, %v399
    %v401 = vrot.slane %v235, %v400
    %v402 = vlaneseq
    %v403 = vshrl.u32 %v402, 7
    %v404 = vsub.s32 3, %v403
    %v405 = vrot.slane %v245, %v404
    %406 = vst.msk [vmem:[#allocation5 + $0x6] sm:$0x3] %vm285, %v377
    %407 = vst.msk [vmem:[#allocation5 + $0x26] sm:$0x3] %vm285, %v381
    %408 = vst.msk [vmem:[#allocation5 + $0x46] sm:$0x3] %vm285, %v385
    %409 = vst.msk [vmem:[#allocation5 + $0x66] sm:$0x3] %vm285, %v389
    %410 = vst.msk [vmem:[#allocation5 + $0x86] sm:$0x3] %vm285, %v393
    %411 = vst.msk [vmem:[#allocation5 + $0xa6] sm:$0x3] %vm285, %v397
    %412 = vst.msk [vmem:[#allocation5 + $0xc6] sm:$0x3] %vm285, %v401
    %413 = vst.msk [vmem:[#allocation5 + $0xe6] sm:$0x3] %vm285, %v405
    %v414 = vlaneseq
    %v415 = vshrl.u32 %v414, 7
    %v416 = vsub.s32 4, %v415
    %v417 = vrot.slane %v175, %v416
    %v418 = vlaneseq
    %v419 = vshrl.u32 %v418, 7
    %v420 = vsub.s32 4, %v419
    %v421 = vrot.slane %v185, %v420
    %v422 = vlaneseq
    %v423 = vshrl.u32 %v422, 7
    %v424 = vsub.s32 4, %v423
    %v425 = vrot.slane %v195, %v424
    %v426 = vlaneseq
    %v427 = vshrl.u32 %v426, 7
    %v428 = vsub.s32 4, %v427
    %v429 = vrot.slane %v205, %v428
    %v430 = vlaneseq
    %v431 = vshrl.u32 %v430, 7
    %v432 = vsub.s32 4, %v431
    %v433 = vrot.slane %v215, %v432
    %v434 = vlaneseq
    %v435 = vshrl.u32 %v434, 7
    %v436 = vsub.s32 4, %v435
    %v437 = vrot.slane %v225, %v436
    %v438 = vlaneseq
    %v439 = vshrl.u32 %v438, 7
    %v440 = vsub.s32 4, %v439
    %v441 = vrot.slane %v235, %v440
    %v442 = vlaneseq
    %v443 = vshrl.u32 %v442, 7
    %v444 = vsub.s32 4, %v443
    %v445 = vrot.slane %v245, %v444
    %446 = vst.msk [vmem:[#allocation5 + $0x8] sm:$0x3] %vm285, %v417
    %447 = vst.msk [vmem:[#allocation5 + $0x28] sm:$0x3] %vm285, %v421
    %448 = vst.msk [vmem:[#allocation5 + $0x48] sm:$0x3] %vm285, %v425
    %449 = vst.msk [vmem:[#allocation5 + $0x68] sm:$0x3] %vm285, %v429
    %450 = vst.msk [vmem:[#allocation5 + $0x88] sm:$0x3] %vm285, %v433
    %451 = vst.msk [vmem:[#allocation5 + $0xa8] sm:$0x3] %vm285, %v437
    %452 = vst.msk [vmem:[#allocation5 + $0xc8] sm:$0x3] %vm285, %v441
    %453 = vst.msk [vmem:[#allocation5 + $0xe8] sm:$0x3] %vm285, %v445
    %v454 = vlaneseq
    %v455 = vshrl.u32 %v454, 7
    %v456 = vsub.s32 5, %v455
    %v457 = vrot.slane %v175, %v456
    %v458 = vlaneseq
    %v459 = vshrl.u32 %v458, 7
    %v460 = vsub.s32 5, %v459
    %v461 = vrot.slane %v185, %v460
    %v462 = vlaneseq
    %v463 = vshrl.u32 %v462, 7
    %v464 = vsub.s32 5, %v463
    %v465 = vrot.slane %v195, %v464
    %v466 = vlaneseq
    %v467 = vshrl.u32 %v466, 7
    %v468 = vsub.s32 5, %v467
    %v469 = vrot.slane %v205, %v468
    %v470 = vlaneseq
    %v471 = vshrl.u32 %v470, 7
    %v472 = vsub.s32 5, %v471
    %v473 = vrot.slane %v215, %v472
    %v474 = vlaneseq
    %v475 = vshrl.u32 %v474, 7
    %v476 = vsub.s32 5, %v475
    %v477 = vrot.slane %v225, %v476
    %v478 = vlaneseq
    %v479 = vshrl.u32 %v478, 7
    %v480 = vsub.s32 5, %v479
    %v481 = vrot.slane %v235, %v480
    %v482 = vlaneseq
    %v483 = vshrl.u32 %v482, 7
    %v484 = vsub.s32 5, %v483
    %v485 = vrot.slane %v245, %v484
    %486 = vst.msk [vmem:[#allocation5 + $0xa] sm:$0x3] %vm285, %v457
    %487 = vst.msk [vmem:[#allocation5 + $0x2a] sm:$0x3] %vm285, %v461
    %488 = vst.msk [vmem:[#allocation5 + $0x4a] sm:$0x3] %vm285, %v465
    %489 = vst.msk [vmem:[#allocation5 + $0x6a] sm:$0x3] %vm285, %v469
    %490 = vst.msk [vmem:[#allocation5 + $0x8a] sm:$0x3] %vm285, %v473
    %491 = vst.msk [vmem:[#allocation5 + $0xaa] sm:$0x3] %vm285, %v477
    %492 = vst.msk [vmem:[#allocation5 + $0xca] sm:$0x3] %vm285, %v481
    %493 = vst.msk [vmem:[#allocation5 + $0xea] sm:$0x3] %vm285, %v485
    %v494 = vlaneseq
    %v495 = vshrl.u32 %v494, 7
    %v496 = vsub.s32 6, %v495
    %v497 = vrot.slane %v175, %v496
    %v498 = vlaneseq
    %v499 = vshrl.u32 %v498, 7
    %v500 = vsub.s32 6, %v499
    %v501 = vrot.slane %v185, %v500
    %v502 = vlaneseq
    %v503 = vshrl.u32 %v502, 7
    %v504 = vsub.s32 6, %v503
    %v505 = vrot.slane %v195, %v504
    %v506 = vlaneseq
    %v507 = vshrl.u32 %v506, 7
    %v508 = vsub.s32 6, %v507
    %v509 = vrot.slane %v205, %v508
    %v510 = vlaneseq
    %v511 = vshrl.u32 %v510, 7
    %v512 = vsub.s32 6, %v511
    %v513 = vrot.slane %v215, %v512
    %v514 = vlaneseq
    %v515 = vshrl.u32 %v514, 7
    %v516 = vsub.s32 6, %v515
    %v517 = vrot.slane %v225, %v516
    %v518 = vlaneseq
    %v519 = vshrl.u32 %v518, 7
    %v520 = vsub.s32 6, %v519
    %v521 = vrot.slane %v235, %v520
    %v522 = vlaneseq
    %v523 = vshrl.u32 %v522, 7
    %v524 = vsub.s32 6, %v523
    %v525 = vrot.slane %v245, %v524
    %526 = vst.msk [vmem:[#allocation5 + $0xc] sm:$0x3] %vm285, %v497
    %527 = vst.msk [vmem:[#allocation5 + $0x2c] sm:$0x3] %vm285, %v501
    %528 = vst.msk [vmem:[#allocation5 + $0x4c] sm:$0x3] %vm285, %v505
    %529 = vst.msk [vmem:[#allocation5 + $0x6c] sm:$0x3] %vm285, %v509
    %530 = vst.msk [vmem:[#allocation5 + $0x8c] sm:$0x3] %vm285, %v513
    %531 = vst.msk [vmem:[#allocation5 + $0xac] sm:$0x3] %vm285, %v517
    %532 = vst.msk [vmem:[#allocation5 + $0xcc] sm:$0x3] %vm285, %v521
    %533 = vst.msk [vmem:[#allocation5 + $0xec] sm:$0x3] %vm285, %v525
    %v534 = vlaneseq
    %v535 = vshrl.u32 %v534, 7
    %v536 = vsub.s32 7, %v535
    %v537 = vrot.slane %v175, %v536
    %v538 = vlaneseq
    %v539 = vshrl.u32 %v538, 7
    %v540 = vsub.s32 7, %v539
    %v541 = vrot.slane %v185, %v540
    %v542 = vlaneseq
    %v543 = vshrl.u32 %v542, 7
    %v544 = vsub.s32 7, %v543
    %v545 = vrot.slane %v195, %v544
    %v546 = vlaneseq
    %v547 = vshrl.u32 %v546, 7
    %v548 = vsub.s32 7, %v547
    %v549 = vrot.slane %v205, %v548
    %v550 = vlaneseq
    %v551 = vshrl.u32 %v550, 7
    %v552 = vsub.s32 7, %v551
    %v553 = vrot.slane %v215, %v552
    %v554 = vlaneseq
    %v555 = vshrl.u32 %v554, 7
    %v556 = vsub.s32 7, %v555
    %v557 = vrot.slane %v225, %v556
    %v558 = vlaneseq
    %v559 = vshrl.u32 %v558, 7
    %v560 = vsub.s32 7, %v559
    %v561 = vrot.slane %v235, %v560
    %v562 = vlaneseq
    %v563 = vshrl.u32 %v562, 7
    %v564 = vsub.s32 7, %v563
    %v565 = vrot.slane %v245, %v564
    %566 = vst.msk [vmem:[#allocation5 + $0xe] sm:$0x3] %vm285, %v537
    %567 = vst.msk [vmem:[#allocation5 + $0x2e] sm:$0x3] %vm285, %v541
    %568 = vst.msk [vmem:[#allocation5 + $0x4e] sm:$0x3] %vm285, %v545
    %569 = vst.msk [vmem:[#allocation5 + $0x6e] sm:$0x3] %vm285, %v549
    %570 = vst.msk [vmem:[#allocation5 + $0x8e] sm:$0x3] %vm285, %v553
    %571 = vst.msk [vmem:[#allocation5 + $0xae] sm:$0x3] %vm285, %v557
    %572 = vst.msk [vmem:[#allocation5 + $0xce] sm:$0x3] %vm285, %v561
    %573 = vst.msk [vmem:[#allocation5 + $0xee] sm:$0x3] %vm285, %v565
    %v574 = vlaneseq
    %v575 = vshrl.u32 %v574, 7
    %v576 = vsub.s32 0, %v575
    %v577 = vrot.slane %v180, %v576
    %v578 = vlaneseq
    %v579 = vshrl.u32 %v578, 7
    %v580 = vsub.s32 0, %v579
    %v581 = vrot.slane %v190, %v580
    %v582 = vlaneseq
    %v583 = vshrl.u32 %v582, 7
    %v584 = vsub.s32 0, %v583
    %v585 = vrot.slane %v200, %v584
    %v586 = vlaneseq
    %v587 = vshrl.u32 %v586, 7
    %v588 = vsub.s32 0, %v587
    %v589 = vrot.slane %v210, %v588
    %v590 = vlaneseq
    %v591 = vshrl.u32 %v590, 7
    %v592 = vsub.s32 0, %v591
    %v593 = vrot.slane %v220, %v592
    %v594 = vlaneseq
    %v595 = vshrl.u32 %v594, 7
    %v596 = vsub.s32 0, %v595
    %v597 = vrot.slane %v230, %v596
    %v598 = vlaneseq
    %v599 = vshrl.u32 %v598, 7
    %v600 = vsub.s32 0, %v599
    %v601 = vrot.slane %v240, %v600
    %v602 = vlaneseq
    %v603 = vshrl.u32 %v602, 7
    %v604 = vsub.s32 0, %v603
    %v605 = vrot.slane %v250, %v604
    %606 = vst.msk [vmem:[#allocation5 + $0x10] sm:$0x3] %vm285, %v577
    %607 = vst.msk [vmem:[#allocation5 + $0x30] sm:$0x3] %vm285, %v581
    %608 = vst.msk [vmem:[#allocation5 + $0x50] sm:$0x3] %vm285, %v585
    %609 = vst.msk [vmem:[#allocation5 + $0x70] sm:$0x3] %vm285, %v589
    %610 = vst.msk [vmem:[#allocation5 + $0x90] sm:$0x3] %vm285, %v593
    %611 = vst.msk [vmem:[#allocation5 + $0xb0] sm:$0x3] %vm285, %v597
    %612 = vst.msk [vmem:[#allocation5 + $0xd0] sm:$0x3] %vm285, %v601
    %613 = vst.msk [vmem:[#allocation5 + $0xf0] sm:$0x3] %vm285, %v605
    %v614 = vlaneseq
    %v615 = vshrl.u32 %v614, 7
    %v616 = vsub.s32 1, %v615
    %v617 = vrot.slane %v180, %v616
    %v618 = vlaneseq
    %v619 = vshrl.u32 %v618, 7
    %v620 = vsub.s32 1, %v619
    %v621 = vrot.slane %v190, %v620
    %v622 = vlaneseq
    %v623 = vshrl.u32 %v622, 7
    %v624 = vsub.s32 1, %v623
    %v625 = vrot.slane %v200, %v624
    %v626 = vlaneseq
    %v627 = vshrl.u32 %v626, 7
    %v628 = vsub.s32 1, %v627
    %v629 = vrot.slane %v210, %v628
    %v630 = vlaneseq
    %v631 = vshrl.u32 %v630, 7
    %v632 = vsub.s32 1, %v631
    %v633 = vrot.slane %v220, %v632
    %v634 = vlaneseq
    %v635 = vshrl.u32 %v634, 7
    %v636 = vsub.s32 1, %v635
    %v637 = vrot.slane %v230, %v636
    %v638 = vlaneseq
    %v639 = vshrl.u32 %v638, 7
    %v640 = vsub.s32 1, %v639
    %v641 = vrot.slane %v240, %v640
    %v642 = vlaneseq
    %v643 = vshrl.u32 %v642, 7
    %v644 = vsub.s32 1, %v643
    %v645 = vrot.slane %v250, %v644
    %646 = vst.msk [vmem:[#allocation5 + $0x12] sm:$0x3] %vm285, %v617
    %647 = vst.msk [vmem:[#allocation5 + $0x32] sm:$0x3] %vm285, %v621
    %648 = vst.msk [vmem:[#allocation5 + $0x52] sm:$0x3] %vm285, %v625
    %649 = vst.msk [vmem:[#allocation5 + $0x72] sm:$0x3] %vm285, %v629
    %650 = vst.msk [vmem:[#allocation5 + $0x92] sm:$0x3] %vm285, %v633
    %651 = vst.msk [vmem:[#allocation5 + $0xb2] sm:$0x3] %vm285, %v637
    %652 = vst.msk [vmem:[#allocation5 + $0xd2] sm:$0x3] %vm285, %v641
    %653 = vst.msk [vmem:[#allocation5 + $0xf2] sm:$0x3] %vm285, %v645
    %v654 = vlaneseq
    %v655 = vshrl.u32 %v654, 7
    %v656 = vsub.s32 2, %v655
    %v657 = vrot.slane %v180, %v656
    %v658 = vlaneseq
    %v659 = vshrl.u32 %v658, 7
    %v660 = vsub.s32 2, %v659
    %v661 = vrot.slane %v190, %v660
    %v662 = vlaneseq
    %v663 = vshrl.u32 %v662, 7
    %v664 = vsub.s32 2, %v663
    %v665 = vrot.slane %v200, %v664
    %v666 = vlaneseq
    %v667 = vshrl.u32 %v666, 7
    %v668 = vsub.s32 2, %v667
    %v669 = vrot.slane %v210, %v668
    %v670 = vlaneseq
    %v671 = vshrl.u32 %v670, 7
    %v672 = vsub.s32 2, %v671
    %v673 = vrot.slane %v220, %v672
    %v674 = vlaneseq
    %v675 = vshrl.u32 %v674, 7
    %v676 = vsub.s32 2, %v675
    %v677 = vrot.slane %v230, %v676
    %v678 = vlaneseq
    %v679 = vshrl.u32 %v678, 7
    %v680 = vsub.s32 2, %v679
    %v681 = vrot.slane %v240, %v680
    %v682 = vlaneseq
    %v683 = vshrl.u32 %v682, 7
    %v684 = vsub.s32 2, %v683
    %v685 = vrot.slane %v250, %v684
    %686 = vst.msk [vmem:[#allocation5 + $0x14] sm:$0x3] %vm285, %v657
    %687 = vst.msk [vmem:[#allocation5 + $0x34] sm:$0x3] %vm285, %v661
    %688 = vst.msk [vmem:[#allocation5 + $0x54] sm:$0x3] %vm285, %v665
    %689 = vst.msk [vmem:[#allocation5 + $0x74] sm:$0x3] %vm285, %v669
    %690 = vst.msk [vmem:[#allocation5 + $0x94] sm:$0x3] %vm285, %v673
    %691 = vst.msk [vmem:[#allocation5 + $0xb4] sm:$0x3] %vm285, %v677
    %692 = vst.msk [vmem:[#allocation5 + $0xd4] sm:$0x3] %vm285, %v681
    %693 = vst.msk [vmem:[#allocation5 + $0xf4] sm:$0x3] %vm285, %v685
    %v694 = vlaneseq
    %v695 = vshrl.u32 %v694, 7
    %v696 = vsub.s32 3, %v695
    %v697 = vrot.slane %v180, %v696
    %v698 = vlaneseq
    %v699 = vshrl.u32 %v698, 7
    %v700 = vsub.s32 3, %v699
    %v701 = vrot.slane %v190, %v700
    %v702 = vlaneseq
    %v703 = vshrl.u32 %v702, 7
    %v704 = vsub.s32 3, %v703
    %v705 = vrot.slane %v200, %v704
    %v706 = vlaneseq
    %v707 = vshrl.u32 %v706, 7
    %v708 = vsub.s32 3, %v707
    %v709 = vrot.slane %v210, %v708
    %v710 = vlaneseq
    %v711 = vshrl.u32 %v710, 7
    %v712 = vsub.s32 3, %v711
    %v713 = vrot.slane %v220, %v712
    %v714 = vlaneseq
    %v715 = vshrl.u32 %v714, 7
    %v716 = vsub.s32 3, %v715
    %v717 = vrot.slane %v230, %v716
    %v718 = vlaneseq
    %v719 = vshrl.u32 %v718, 7
    %v720 = vsub.s32 3, %v719
    %v721 = vrot.slane %v240, %v720
    %v722 = vlaneseq
    %v723 = vshrl.u32 %v722, 7
    %v724 = vsub.s32 3, %v723
    %v725 = vrot.slane %v250, %v724
    %726 = vst.msk [vmem:[#allocation5 + $0x16] sm:$0x3] %vm285, %v697
    %727 = vst.msk [vmem:[#allocation5 + $0x36] sm:$0x3] %vm285, %v701
    %728 = vst.msk [vmem:[#allocation5 + $0x56] sm:$0x3] %vm285, %v705
    %729 = vst.msk [vmem:[#allocation5 + $0x76] sm:$0x3] %vm285, %v709
    %730 = vst.msk [vmem:[#allocation5 + $0x96] sm:$0x3] %vm285, %v713
    %731 = vst.msk [vmem:[#allocation5 + $0xb6] sm:$0x3] %vm285, %v717
    %732 = vst.msk [vmem:[#allocation5 + $0xd6] sm:$0x3] %vm285, %v721
    %733 = vst.msk [vmem:[#allocation5 + $0xf6] sm:$0x3] %vm285, %v725
    %v734 = vlaneseq
    %v735 = vshrl.u32 %v734, 7
    %v736 = vsub.s32 4, %v735
    %v737 = vrot.slane %v180, %v736
    %v738 = vlaneseq
    %v739 = vshrl.u32 %v738, 7
    %v740 = vsub.s32 4, %v739
    %v741 = vrot.slane %v190, %v740
    %v742 = vlaneseq
    %v743 = vshrl.u32 %v742, 7
    %v744 = vsub.s32 4, %v743
    %v745 = vrot.slane %v200, %v744
    %v746 = vlaneseq
    %v747 = vshrl.u32 %v746, 7
    %v748 = vsub.s32 4, %v747
    %v749 = vrot.slane %v210, %v748
    %v750 = vlaneseq
    %v751 = vshrl.u32 %v750, 7
    %v752 = vsub.s32 4, %v751
    %v753 = vrot.slane %v220, %v752
    %v754 = vlaneseq
    %v755 = vshrl.u32 %v754, 7
    %v756 = vsub.s32 4, %v755
    %v757 = vrot.slane %v230, %v756
    %v758 = vlaneseq
    %v759 = vshrl.u32 %v758, 7
    %v760 = vsub.s32 4, %v759
    %v761 = vrot.slane %v240, %v760
    %v762 = vlaneseq
    %v763 = vshrl.u32 %v762, 7
    %v764 = vsub.s32 4, %v763
    %v765 = vrot.slane %v250, %v764
    %766 = vst.msk [vmem:[#allocation5 + $0x18] sm:$0x3] %vm285, %v737
    %767 = vst.msk [vmem:[#allocation5 + $0x38] sm:$0x3] %vm285, %v741
    %768 = vst.msk [vmem:[#allocation5 + $0x58] sm:$0x3] %vm285, %v745
    %769 = vst.msk [vmem:[#allocation5 + $0x78] sm:$0x3] %vm285, %v749
    %770 = vst.msk [vmem:[#allocation5 + $0x98] sm:$0x3] %vm285, %v753
    %771 = vst.msk [vmem:[#allocation5 + $0xb8] sm:$0x3] %vm285, %v757
    %772 = vst.msk [vmem:[#allocation5 + $0xd8] sm:$0x3] %vm285, %v761
    %773 = vst.msk [vmem:[#allocation5 + $0xf8] sm:$0x3] %vm285, %v765
    %v774 = vlaneseq
    %v775 = vshrl.u32 %v774, 7
    %v776 = vsub.s32 5, %v775
    %v777 = vrot.slane %v180, %v776
    %v778 = vlaneseq
    %v779 = vshrl.u32 %v778, 7
    %v780 = vsub.s32 5, %v779
    %v781 = vrot.slane %v190, %v780
    %v782 = vlaneseq
    %v783 = vshrl.u32 %v782, 7
    %v784 = vsub.s32 5, %v783
    %v785 = vrot.slane %v200, %v784
    %v786 = vlaneseq
    %v787 = vshrl.u32 %v786, 7
    %v788 = vsub.s32 5, %v787
    %v789 = vrot.slane %v210, %v788
    %v790 = vlaneseq
    %v791 = vshrl.u32 %v790, 7
    %v792 = vsub.s32 5, %v791
    %v793 = vrot.slane %v220, %v792
    %v794 = vlaneseq
    %v795 = vshrl.u32 %v794, 7
    %v796 = vsub.s32 5, %v795
    %v797 = vrot.slane %v230, %v796
    %v798 = vlaneseq
    %v799 = vshrl.u32 %v798, 7
    %v800 = vsub.s32 5, %v799
    %v801 = vrot.slane %v240, %v800
    %v802 = vlaneseq
    %v803 = vshrl.u32 %v802, 7
    %v804 = vsub.s32 5, %v803
    %v805 = vrot.slane %v250, %v804
    %806 = vst.msk [vmem:[#allocation5 + $0x1a] sm:$0x3] %vm285, %v777
    %807 = vst.msk [vmem:[#allocation5 + $0x3a] sm:$0x3] %vm285, %v781
    %808 = vst.msk [vmem:[#allocation5 + $0x5a] sm:$0x3] %vm285, %v785
    %809 = vst.msk [vmem:[#allocation5 + $0x7a] sm:$0x3] %vm285, %v789
    %810 = vst.msk [vmem:[#allocation5 + $0x9a] sm:$0x3] %vm285, %v793
    %811 = vst.msk [vmem:[#allocation5 + $0xba] sm:$0x3] %vm285, %v797
    %812 = vst.msk [vmem:[#allocation5 + $0xda] sm:$0x3] %vm285, %v801
    %813 = vst.msk [vmem:[#allocation5 + $0xfa] sm:$0x3] %vm285, %v805
    %v814 = vlaneseq
    %v815 = vshrl.u32 %v814, 7
    %v816 = vsub.s32 6, %v815
    %v817 = vrot.slane %v180, %v816
    %v818 = vlaneseq
    %v819 = vshrl.u32 %v818, 7
    %v820 = vsub.s32 6, %v819
    %v821 = vrot.slane %v190, %v820
    %v822 = vlaneseq
    %v823 = vshrl.u32 %v822, 7
    %v824 = vsub.s32 6, %v823
    %v825 = vrot.slane %v200, %v824
    %v826 = vlaneseq
    %v827 = vshrl.u32 %v826, 7
    %v828 = vsub.s32 6, %v827
    %v829 = vrot.slane %v210, %v828
    %v830 = vlaneseq
    %v831 = vshrl.u32 %v830, 7
    %v832 = vsub.s32 6, %v831
    %v833 = vrot.slane %v220, %v832
    %v834 = vlaneseq
    %v835 = vshrl.u32 %v834, 7
    %v836 = vsub.s32 6, %v835
    %v837 = vrot.slane %v230, %v836
    %v838 = vlaneseq
    %v839 = vshrl.u32 %v838, 7
    %v840 = vsub.s32 6, %v839
    %v841 = vrot.slane %v240, %v840
    %v842 = vlaneseq
    %v843 = vshrl.u32 %v842, 7
    %v844 = vsub.s32 6, %v843
    %v845 = vrot.slane %v250, %v844
    %846 = vst.msk [vmem:[#allocation5 + $0x1c] sm:$0x3] %vm285, %v817
    %847 = vst.msk [vmem:[#allocation5 + $0x3c] sm:$0x3] %vm285, %v821
    %848 = vst.msk [vmem:[#allocation5 + $0x5c] sm:$0x3] %vm285, %v825
    %849 = vst.msk [vmem:[#allocation5 + $0x7c] sm:$0x3] %vm285, %v829
    %850 = vst.msk [vmem:[#allocation5 + $0x9c] sm:$0x3] %vm285, %v833
    %851 = vst.msk [vmem:[#allocation5 + $0xbc] sm:$0x3] %vm285, %v837
    %852 = vst.msk [vmem:[#allocation5 + $0xdc] sm:$0x3] %vm285, %v841
    %853 = vst.msk [vmem:[#allocation5 + $0xfc] sm:$0x3] %vm285, %v845
    %v854 = vlaneseq
    %v855 = vshrl.u32 %v854, 7
    %v856 = vsub.s32 7, %v855
    %v857 = vrot.slane %v180, %v856
    %v858 = vlaneseq
    %v859 = vshrl.u32 %v858, 7
    %v860 = vsub.s32 7, %v859
    %v861 = vrot.slane %v190, %v860
    %v862 = vlaneseq
    %v863 = vshrl.u32 %v862, 7
    %v864 = vsub.s32 7, %v863
    %v865 = vrot.slane %v200, %v864
    %v866 = vlaneseq
    %v867 = vshrl.u32 %v866, 7
    %v868 = vsub.s32 7, %v867
    %v869 = vrot.slane %v210, %v868
    %v870 = vlaneseq
    %v871 = vshrl.u32 %v870, 7
    %v872 = vsub.s32 7, %v871
    %v873 = vrot.slane %v220, %v872
    %v874 = vlaneseq
    %v875 = vshrl.u32 %v874, 7
    %v876 = vsub.s32 7, %v875
    %v877 = vrot.slane %v230, %v876
    %v878 = vlaneseq
    %v879 = vshrl.u32 %v878, 7
    %v880 = vsub.s32 7, %v879
    %v881 = vrot.slane %v240, %v880
    %v882 = vlaneseq
    %v883 = vshrl.u32 %v882, 7
    %v884 = vsub.s32 7, %v883
    %v885 = vrot.slane %v250, %v884
    %886 = vst.msk [vmem:[#allocation5 + $0x1e] sm:$0x3] %vm285, %v857
    %887 = vst.msk [vmem:[#allocation5 + $0x3e] sm:$0x3] %vm285, %v861
    %888 = vst.msk [vmem:[#allocation5 + $0x5e] sm:$0x3] %vm285, %v865
    %889 = vst.msk [vmem:[#allocation5 + $0x7e] sm:$0x3] %vm285, %v869
    %890 = vst.msk [vmem:[#allocation5 + $0x9e] sm:$0x3] %vm285, %v873
    %891 = vst.msk [vmem:[#allocation5 + $0xbe] sm:$0x3] %vm285, %v877
    %892 = vst.msk [vmem:[#allocation5 + $0xde] sm:$0x3] %vm285, %v881
    %893 = vst.msk [vmem:[#allocation5 + $0xfe] sm:$0x3] %vm285, %v885
    // Predicated region
    $region10: #{tpu_custom_call.1} parent=1 // pred_check
      _
    $region11: #{tpu_custom_call.1} parent=1 // pred_check_branch
      %895 = sbr.rel (0) target = $region13
    $region12: #{tpu_custom_call.1} parent=1 // pred_region
      %s897 = ssub.s32 4096, 4096
      %898 = vsyncadd [#allocation4], %s897
      %s899 = sshll.u32 [#allocation5], 4
      %s900 = int_to_ptr.vmem [resolvable:$true] %s899
      %905 = dma.vmem_to_hbm [thread:$0]  %s900, 4096, %s1, [#allocation4], 128, 128, 8
    $region13: #{tpu_custom_call.1} parent=1 // pred_fallthru
      _
    // Predicated region
    $region14: #{tpu_custom_call.1} parent=1 // pred_check
      _
    $region15: #{tpu_custom_call.1} parent=1 // pred_check_branch
      %907 = sbr.rel (0) target = $region17
    $region16: #{tpu_custom_call.1} parent=1 // pred_region
      %908 = dma.done [#allocation4], 4096
    $region17: #{tpu_custom_call.1} parent=1 // pred_fallthru
      _
    %909 = vsyncpa [#allocation3], 1
    %910 = vsyncpa [#allocation4], 1

</llo_original>
